<compile_context>
chip_gen: v6e
topology: v6e:2x2x1
jax: 0.10.0
libtpu: 0.0.40
codegen_flags: <defaults>
</compile_context>

<pallas_src>
import jax
import jax.numpy as jnp
from jax.experimental import pallas as pl
from jax.experimental.pallas import tpu as pltpu


def _round_up(x, m):
    return ((x + m - 1) // m) * m


def _sememe_reduce_kernel(embs_ref, inv_ref, out_ref):
    """embs_ref: (mt, L*C), inv_ref: (mt, C), out_ref: (mt, C); C = G*D (lane group)."""
    C = out_ref.shape[-1]
    L = embs_ref.shape[-1] // C
    # Sum the L word embeddings for each packed row group. Slices are static and
    # (when C == 128) perfectly lane-aligned -> plain dense VPU adds.
    acc = embs_ref[:, 0:C].astype(jnp.float32)
    for l in range(1, L):
        acc = acc + embs_ref[:, l * C:(l + 1) * C].astype(jnp.float32)
    # Normalization: inv = 1 / (count + 1e-6), precomputed in the wrapper.
    out_ref[...] = (acc * inv_ref[...]).astype(out_ref.dtype)


def sememe_encoder_forward(sememes, sememe_to_word, word_embedding, pad_id,
                           *, m_tile=512, embs_dtype=None):
    """sememes: [B, S] int32 sememe ids -> [B, S, D] float32 sememe representations."""
    B, S = sememes.shape
    L = sememe_to_word.shape[1]
    D = word_embedding.shape[1]
    if embs_dtype is None:
        embs_dtype = word_embedding.dtype

    # Lane-packing factor: pack G rows into one 128-lane group when D divides 128.
    if D % 128 == 0:
        G = 1
    elif 128 % D == 0:
        G = 128 // D
    else:
        G = 1  # fallback: last block dims equal full array dims (still legal, lane-padded)
    C = G * D  # lane-group width of the kernel output

    # ---- glue: small integer work (cheap, stays in XLA) ----------------------------
    words = sememe_to_word[sememes].reshape(B * S, L).astype(jnp.int32)   # [N, L]
    N = B * S

    M = -(-N // G)                                   # packed rows
    mt = max(8, min(m_tile, _round_up(M, 8)))        # effective tile (multiple of 8)
    M_pad = _round_up(M, mt)
    N_pad = M_pad * G

    if N_pad != N:
        words = jnp.pad(words, ((0, N_pad - N), (0, 0)), constant_values=pad_id)

    # Per-row normalizer from the tiny int array (mask never touches the kernel).
    counts = jnp.sum((words != pad_id).astype(jnp.float32), axis=1)       # [N_pad]
    inv = 1.0 / (counts + 1e-6)                                           # [N_pad] f32
    inv_rep = jnp.broadcast_to(inv.reshape(M_pad, G, 1),
                               (M_pad, G, D)).reshape(M_pad, C).astype(jnp.float32)

    # Zero the pad row of the embedding table: exactly equivalent to the mask multiply
    # (masked positions are precisely those whose word id == pad_id).
    table = word_embedding.astype(embs_dtype).at[pad_id].set(0)

    # Rearrange word ids so the gather directly produces the packed lane-dense layout:
    #   embs_flat[m, l*C + g*D + d] = table[words[m*G + g, l], d]
    wr = words.reshape(M_pad, G, L).transpose(0, 2, 1)                    # [M_pad, L, G]
    embs = table[wr]                                                      # [M_pad, L, G, D]
    embs_flat = embs.reshape(M_pad, L * C)                                # [M_pad, L*C]

    # ---- Pallas kernel: masked-sum over L + normalize, lane-dense ------------------
    out_packed = pl.pallas_call(
        _sememe_reduce_kernel,
        out_shape=jax.ShapeDtypeStruct((M_pad, C), jnp.float32),
        grid_spec=pltpu.PrefetchScalarGridSpec(
            num_scalar_prefetch=0,
            grid=(M_pad // mt,),
            in_specs=[
                pl.BlockSpec((mt, L * C), lambda i: (i, 0)),
                pl.BlockSpec((mt, C), lambda i: (i, 0)),
            ],
            out_specs=pl.BlockSpec((mt, C), lambda i: (i, 0)),
        ),
        compiler_params=pltpu.CompilerParams(
            dimension_semantics=("parallel",),
            vmem_limit_bytes=32 * 1024 * 1024,
        ),
    )(embs_flat, inv_rep)

    # Unpack: [M_pad, G*D] -> [M_pad*G, D] (pure metadata reshape) -> slice -> [B, S, D]
    return out_packed.reshape(M_pad * G, D)[:N].reshape(B, S, D)


def _reference(sememes, sememe_to_word, word_embedding, pad_id):
    """Faithful f32 re-implementation of SememeEncoder.forward."""
    words = sememe_to_word[sememes]                       # [B, S, L]
    mask = (words != pad_id).astype(jnp.float32)          # [B, S, L]
    embs = word_embedding[words] * mask[..., None]        # [B, S, L, D]
    summed = embs.sum(-2)                                 # [B, S, D]
    return summed / (mask.sum(-1, keepdims=True) + 1e-6)


if __name__ == "__main__":
    key = jax.random.PRNGKey(0)

    # Small synthetic shapes consistent with the module.
    B, S = 2, 8            # batch of sememe-id sequences
    L = 5                  # max_word_len (hard-coded 5 in the module)
    D = 32                 # word embedding dim
    V_SEM = 20             # sememe vocab size
    V_WORD = 50            # word vocab size
    PAD_ID = 1             # word_vocab.pad()
    N_SPECIAL = 4          # sememe_vocab.nspecial -> all-pad rows

    k_emb, k_s2w, k_len, k_sem = jax.random.split(key, 4)

    # Deterministic "pretrained" word embedding table. The pad row is deliberately
    # NOT zeroed here so the test exercises the kernel's pad masking.
    word_embedding = jax.random.normal(k_emb, (V_WORD, D), dtype=jnp.float32)

    # Deterministic sememe_to_word table: each non-special sememe maps to 1..L words,
    # padded with PAD_ID; special sememes are all-pad.
    rand_words = jax.random.randint(k_s2w, (V_SEM, L), 2, V_WORD, dtype=jnp.int32)
    n_words = jax.random.randint(k_len, (V_SEM, 1), 1, L + 1, dtype=jnp.int32)
    pos = jnp.arange(L)[None, :]
    sememe_to_word = jnp.where(pos < n_words, rand_words, PAD_ID)
    sememe_to_word = sememe_to_word.at[:N_SPECIAL].set(PAD_ID)

    # Input sememe ids (includes some special / all-pad sememes).
    sememes = jax.random.randint(k_sem, (B, S), 0, V_SEM, dtype=jnp.int32)

    ref = _reference(sememes, sememe_to_word, word_embedding, PAD_ID)

    # f32 path: tight check against the reference.
    out_f32 = sememe_encoder_forward(sememes, sememe_to_word, word_embedding, PAD_ID,
                                     embs_dtype=jnp.float32)
    out_f32 = jax.block_until_ready(out_f32)
    assert out_f32.shape == (B, S, D)
    assert out_f32.dtype == jnp.float32
    assert jnp.allclose(out_f32, ref, atol=1e-5, rtol=1e-5)

    # bf16-storage path (halved HBM read of the gathered embeddings): loose check.
    out_bf16 = sememe_encoder_forward(sememes, sememe_to_word, word_embedding, PAD_ID,
                                      embs_dtype=jnp.bfloat16)
    out_bf16 = jax.block_until_ready(out_bf16)
    assert out_bf16.shape == (B, S, D)
    assert jnp.allclose(out_bf16, ref, atol=5e-2, rtol=5e-2)

    print("KERNEL_OK")
</pallas_src>

<mosaic_0001>
module attributes {stable_mosaic.version = 11 : i64} {
  func.func @_sememe_reduce_kernel(%arg0: i32, %arg1: memref<8x640xf32, #tpu.memory_space<vmem>>, %arg2: memref<8x128xf32, #tpu.memory_space<vmem>>, %arg3: memref<8x128xf32, #tpu.memory_space<vmem>>) attributes {dimension_semantics = [#tpu.dimension_semantics<parallel>], iteration_bounds = array<i64: 1>, scalar_prefetch = 0 : i64, scratch_operands = 0 : i64, tpu.core_type = #tpu.core_type<tc>, window_params = [{transform_indices = @transform_0, window_bounds = array<i64: 8, 640>}, {transform_indices = @transform_1, window_bounds = array<i64: 8, 128>}, {transform_indices = @transform_2, window_bounds = array<i64: 8, 128>}]} {
    %c0 = arith.constant 0 : index
    %c0_0 = arith.constant 0 : index
    %0 = vector.load %arg1[%c0, %c0_0] : memref<8x640xf32, #tpu.memory_space<vmem>>, vector<8x128xf32>
    %c0_1 = arith.constant 0 : index
    %c128 = arith.constant 128 : index
    %1 = vector.load %arg1[%c0_1, %c128] : memref<8x640xf32, #tpu.memory_space<vmem>>, vector<8x128xf32>
    %2 = arith.addf %0, %1 : vector<8x128xf32>
    %c0_2 = arith.constant 0 : index
    %c256 = arith.constant 256 : index
    %3 = vector.load %arg1[%c0_2, %c256] : memref<8x640xf32, #tpu.memory_space<vmem>>, vector<8x128xf32>
    %4 = arith.addf %2, %3 : vector<8x128xf32>
    %c0_3 = arith.constant 0 : index
    %c384 = arith.constant 384 : index
    %5 = vector.load %arg1[%c0_3, %c384] : memref<8x640xf32, #tpu.memory_space<vmem>>, vector<8x128xf32>
    %6 = arith.addf %4, %5 : vector<8x128xf32>
    %c0_4 = arith.constant 0 : index
    %c512 = arith.constant 512 : index
    %7 = vector.load %arg1[%c0_4, %c512] : memref<8x640xf32, #tpu.memory_space<vmem>>, vector<8x128xf32>
    %8 = arith.addf %6, %7 : vector<8x128xf32>
    %c0_5 = arith.constant 0 : index
    %c0_6 = arith.constant 0 : index
    %9 = vector.load %arg2[%c0_5, %c0_6] : memref<8x128xf32, #tpu.memory_space<vmem>>, vector<8x128xf32>
    %10 = arith.mulf %8, %9 : vector<8x128xf32>
    %c0_7 = arith.constant 0 : index
    %c0_8 = arith.constant 0 : index
    %11 = vector.load %arg3[%c0_7, %c0_8] : memref<8x128xf32, #tpu.memory_space<vmem>>, vector<8x128xf32>
    tpu.vector_store %arg3[%c0_7, %c0_8], %10 {strides = array<i32>} : memref<8x128xf32, #tpu.memory_space<vmem>>, vector<8x128xf32>,
    return
  }
  func.func @transform_0(%arg0: i32) -> (i32, i32) {
    %c0_i32 = arith.constant 0 : i32
    %c0_i32_0 = arith.constant 0 : i32
    return %arg0, %c0_i32 : i32, i32
  }
  func.func @transform_1(%arg0: i32) -> (i32, i32) {
    %c0_i32 = arith.constant 0 : i32
    %c0_i32_0 = arith.constant 0 : i32
    return %arg0, %c0_i32 : i32, i32
  }
  func.func @transform_2(%arg0: i32) -> (i32, i32) {
    %c0_i32 = arith.constant 0 : i32
    %c0_i32_0 = arith.constant 0 : i32
    return %arg0, %c0_i32 : i32, i32
  }
}

</mosaic_0001>

<llo_original>
// kernel: tpu_custom_call.1
$region0: #{tpu_custom_call.1}
  #allocation0 [shape = 'u32[]', space=smem, size = 0x4, offset = 0x4, fixed_abs, tag = 'smem constant byte address 0x4 - core index']
  #allocation1 [shape = 'u32[144,128]{1,0:T(1,128)}', space=vmem, size = 0x12000, scoped, tag = 'internal scratch']
  %s0 = inlined_call_operand.hbm [shape: f32[8,640], index: 0, kind: input, shape index: {}]
  %s1 = inlined_call_operand.hbm [shape: f32[8,128], index: 1, kind: input, shape index: {}]
  %s2 = inlined_call_operand.hbm [shape: f32[8,128], index: 2, kind: output, shape index: {}]
  %s3 = sld [smem:[#allocation0]]
  $region26: #{tpu_custom_call.1} parent=0
    _
  %s5 = ssub.s32 1, %s3
  %s6 = scalar_select 0, %s5, %s3
  $region1: #{tpu_custom_call.1} parent=0
    #allocation2 [shape = 'u8[20480]{0}', space=vmem, size = 0x5000, scoped, tag = 'input window, operand 0, single buffered']
    #allocation3 [shape = 's32[1]{0}', space=sflag, size = 0x4, scoped, tag = 'scoped memory for tpu_custom_call.1']
    #allocation4 [shape = 's32[1]{0}', space=sflag, size = 0x4, scoped, tag = 'scoped memory for tpu_custom_call.1']
    #allocation5 [shape = 'u8[4096]{0}', space=vmem, size = 0x1000, scoped, tag = 'input window, operand 1, single buffered']
    #allocation6 [shape = 's32[1]{0}', space=sflag, size = 0x4, scoped, tag = 'scoped memory for tpu_custom_call.1']
    #allocation7 [shape = 'u8[4096]{0}', space=vmem, size = 0x1000, scoped, tag = 'output window, operand 0, single buffered']
    %7 = vsyncpa [#allocation3], 0
    %8 = vsyncpa [#allocation6], 0
    %9 = vsyncpa [#allocation4], 0
    // Predicated region
    $region2: #{tpu_custom_call.1} parent=1 // pred_check
      _
    $region3: #{tpu_custom_call.1} parent=1 // pred_check_branch
      %11 = sbr.rel (0) target = $region5
    $region4: #{tpu_custom_call.1} parent=1 // pred_region
      %s13 = ssub.s32 640, 640
      %14 = vsyncadd [#allocation3], %s13
      %s16 = sshll.u32 [#allocation2], 4
      %s17 = int_to_ptr.vmem [resolvable:$true] %s16
      %19 = dma.hbm_to_vmem [thread:$0]  %s0, 640, %s17, [#allocation3]
    $region5: #{tpu_custom_call.1} parent=1 // pred_fallthru
      _
    // Predicated region
    $region6: #{tpu_custom_call.1} parent=1 // pred_check
      _
    $region7: #{tpu_custom_call.1} parent=1 // pred_check_branch
      %21 = sbr.rel (0) target = $region9
    $region8: #{tpu_custom_call.1} parent=1 // pred_region
      %s23 = ssub.s32 128, 128
      %24 = vsyncadd [#allocation6], %s23
      %s26 = sshll.u32 [#allocation5], 4
      %s27 = int_to_ptr.vmem [resolvable:$true] %s26
      %29 = dma.hbm_to_vmem [thread:$0]  %s1, 128, %s27, [#allocation6]
    $region9: #{tpu_custom_call.1} parent=1 // pred_fallthru
      _
    // Predicated region
    $region10: #{tpu_custom_call.1} parent=1 // pred_check
      _
    $region11: #{tpu_custom_call.1} parent=1 // pred_check_branch
      %31 = sbr.rel (0) target = $region13
    $region12: #{tpu_custom_call.1} parent=1 // pred_region
      %32 = dma.done [#allocation3], 640
    $region13: #{tpu_custom_call.1} parent=1 // pred_fallthru
      _
    // Predicated region
    $region14: #{tpu_custom_call.1} parent=1 // pred_check
      _
    $region15: #{tpu_custom_call.1} parent=1 // pred_check_branch
      %34 = sbr.rel (0) target = $region17
    $region16: #{tpu_custom_call.1} parent=1 // pred_region
      %35 = dma.done [#allocation6], 128
    $region17: #{tpu_custom_call.1} parent=1 // pred_fallthru
      _
    %v36 = vld [vmem:[#allocation2] sm:$0xff]
    %v37 = vld [vmem:[#allocation2 + $0x8] sm:$0xff]
    %v38 = vadd.f32 %v36, %v37
    %v39 = vld [vmem:[#allocation2 + $0x10] sm:$0xff]
    %v40 = vadd.f32 %v38, %v39
    %v41 = vld [vmem:[#allocation2 + $0x18] sm:$0xff]
    %v42 = vadd.f32 %v40, %v41
    %v43 = vld [vmem:[#allocation2 + $0x20] sm:$0xff]
    %v44 = vadd.f32 %v42, %v43
    %v45 = vld [vmem:[#allocation5] sm:$0xff]
    %v46 = vmul.f32 %v44, %v45
    %47 = vst [vmem:[#allocation7] sm:$0xff] %v46
    // Predicated region
    $region18: #{tpu_custom_call.1} parent=1 // pred_check
      _
    $region19: #{tpu_custom_call.1} parent=1 // pred_check_branch
      %49 = sbr.rel (0) target = $region21
    $region20: #{tpu_custom_call.1} parent=1 // pred_region
      %s51 = ssub.s32 128, 128
      %52 = vsyncadd [#allocation4], %s51
      %s54 = sshll.u32 [#allocation7], 4
      %s55 = int_to_ptr.vmem [resolvable:$true] %s54
      %57 = dma.vmem_to_hbm [thread:$0]  %s55, 128, %s2, [#allocation4]
    $region21: #{tpu_custom_call.1} parent=1 // pred_fallthru
      _
    // Predicated region
    $region22: #{tpu_custom_call.1} parent=1 // pred_check
      _
    $region23: #{tpu_custom_call.1} parent=1 // pred_check_branch
      %59 = sbr.rel (0) target = $region25
    $region24: #{tpu_custom_call.1} parent=1 // pred_region
      %60 = dma.done [#allocation4], 128
    $region25: #{tpu_custom_call.1} parent=1 // pred_fallthru
      _
    %61 = vsyncpa [#allocation3], 1
    %62 = vsyncpa [#allocation6], 1
    %63 = vsyncpa [#allocation4], 1

</llo_original>
